<compile_context>
chip_gen: v5e
topology: v5e:2x2
jax: 0.10.0
libtpu: 0.0.40
codegen_flags: <defaults>
</compile_context>

<pallas_src>
import jax
import jax.numpy as jnp
from jax.experimental import pallas as pl
from jax.experimental.pallas import tpu as pltpu


def _linear_kernel(x_ref, w_ref, b_ref, o_ref):
    # x_ref: (TILE, D)   VMEM, pipelined per grid step
    # w_ref: (1, D)      VMEM, resident across the whole grid
    # b_ref: (1,)        SMEM scalar
    # o_ref: (1, 1, TILE) VMEM, lane-dense output row for this tile
    b = b_ref[0]                                   # scalar read, once per tile
    prod = x_ref[...] * w_ref[...]                 # VPU mul, sublane-broadcast of W row
    row_sums = jnp.sum(prod, axis=1)               # XLU lane reduce -> (TILE,)
    o_ref[...] = (row_sums + b).reshape(o_ref.shape)


def _choose_tile_n(n, d, requested=None):
    """Pick a row tile: multiple of 128, double-buffered footprint well under the
    32 MiB scoped-VMEM default (safe on v5e/v6e and v7x's 64 MiB physical VMEM)."""
    if requested is None:
        rows_per_4mib = max(128, (4 * 1024 * 1024) // (d * 4))  # ~4 MiB per x buffer
        tile = min(8192, rows_per_4mib)
    else:
        tile = requested
    tile = max(128, (tile // 128) * 128)
    n_rounded = pl.cdiv(n, 128) * 128
    return min(tile, n_rounded)


def linear_model(x, weight, bias, *, tile_n=None):
    """x: (N, D) f32, weight: (D, 1) f32, bias: (1,) f32 -> (N, 1) f32."""
    n, d = x.shape
    assert weight.shape == (d, 1)
    assert bias.shape == (1,)

    tile = _choose_tile_n(n, d, tile_n)
    n_pad = pl.cdiv(n, tile) * tile
    x = x.astype(jnp.float32)
    if n_pad != n:
        x = jnp.pad(x, ((0, n_pad - n), (0, 0)))
    num_tiles = n_pad // tile

    w_row = weight.astype(jnp.float32).reshape(1, d)   # lane-major weight row
    bias = bias.astype(jnp.float32)

    out = pl.pallas_call(
        _linear_kernel,
        out_shape=jax.ShapeDtypeStruct((num_tiles, 1, tile), jnp.float32),
        grid=(num_tiles,),
        in_specs=[
            pl.BlockSpec((tile, d), lambda i: (i, 0)),          # x row tile (pipelined)
            pl.BlockSpec((1, d), lambda i: (0, 0)),             # W row, stays resident
            pl.BlockSpec(memory_space=pltpu.MemorySpace.SMEM),  # bias scalar
        ],
        out_specs=pl.BlockSpec((1, 1, tile), lambda i: (i, 0, 0)),
        compiler_params=pltpu.CompilerParams(
            dimension_semantics=("parallel",)),
        cost_estimate=pl.CostEstimate(
            flops=2 * n_pad * d,
            transcendentals=0,
            bytes_accessed=4 * (n_pad * d + d + n_pad)),
    )(x, w_row, bias)

    # Lane-dense slab -> (N, 1); drop padded rows.
    return out.reshape(n_pad, 1)[:n]


if __name__ == "__main__":
    key = jax.random.PRNGKey(0)
    kx, kw, kb = jax.random.split(key, 3)

    NDIM = 32

    # Deterministic "parameters" (stand-in for torch.randn init).
    weight = jax.random.normal(kw, (NDIM, 1), dtype=jnp.float32)
    bias = jax.random.normal(kb, (1,), dtype=jnp.float32)

    # Case 1: ragged batch + explicit small tile -> exercises multi-step grid,
    # padding, and the lane-dense output path (640 rows -> 3 tiles of 256).
    N = 640
    x = jax.random.normal(kx, (N, NDIM), dtype=jnp.float32)
    out = linear_model(x, weight, bias, tile_n=256)
    jax.block_until_ready(out)
    ref = jnp.dot(x, weight, precision=jax.lax.Precision.HIGHEST) + bias
    assert out.shape == (N, 1)
    assert jnp.allclose(out, ref, atol=1e-4, rtol=1e-4)

    # Case 2: tiny batch (original module scale), default tile selection.
    x2 = jax.random.normal(kx, (8, NDIM), dtype=jnp.float32)
    out2 = linear_model(x2, weight, bias)
    jax.block_until_ready(out2)
    ref2 = jnp.dot(x2, weight, precision=jax.lax.Precision.HIGHEST) + bias
    assert out2.shape == (8, 1)
    assert jnp.allclose(out2, ref2, atol=1e-4, rtol=1e-4)

    print("KERNEL_OK")
</pallas_src>

<mosaic_0001>
module attributes {stable_mosaic.version = 11 : i64} {
  func.func @_linear_kernel(%arg0: i32, %arg1: memref<256x32xf32, #tpu.memory_space<vmem>>, %arg2: memref<1x32xf32, #tpu.memory_space<vmem>>, %arg3: memref<1xf32, #tpu.memory_space<smem>>, %arg4: memref<1x1x256xf32, #tpu.memory_space<vmem>>) attributes {dimension_semantics = [#tpu.dimension_semantics<parallel>], iteration_bounds = array<i64: 3>, scalar_prefetch = 0 : i64, scratch_operands = 0 : i64, tpu.core_type = #tpu.core_type<tc>, window_params = [{transform_indices = @transform_0, window_bounds = array<i64: 256, 32>}, {pipeline_mode = #tpu.pipeline_mode<synchronous>, transform_indices = @transform_1, window_bounds = array<i64: 1, 32>}, {transform_indices = @transform_2, window_bounds = array<i64: 1>}, {transform_indices = @transform_3, window_bounds = array<i64: 1, 1, 256>}]} {
    %c0 = arith.constant 0 : index
    %0 = memref.load %arg3[%c0] : memref<1xf32, #tpu.memory_space<smem>>
    %c0_0 = arith.constant 0 : index
    %c0_1 = arith.constant 0 : index
    %1 = vector.load %arg1[%c0_0, %c0_1] : memref<256x32xf32, #tpu.memory_space<vmem>>, vector<256x32xf32>
    %c0_2 = arith.constant 0 : index
    %c0_3 = arith.constant 0 : index
    %2 = vector.load %arg2[%c0_2, %c0_3] : memref<1x32xf32, #tpu.memory_space<vmem>>, vector<1x32xf32>
    %3 = vector.broadcast %2 : vector<1x32xf32> to vector<256x32xf32>
    %4 = arith.mulf %1, %3 : vector<256x32xf32>
    %cst = arith.constant dense<0.000000e+00> : vector<256xf32>
    %5 = vector.multi_reduction <add>, %4, %cst [1] : vector<256x32xf32> to vector<256xf32>
    %6 = vector.broadcast %0 : f32 to vector<256xf32>
    %7 = arith.addf %5, %6 : vector<256xf32>
    %8 = vector.shape_cast %7 : vector<256xf32> to vector<1x1x256xf32>
    %c0_4 = arith.constant 0 : index
    %c0_5 = arith.constant 0 : index
    %c0_6 = arith.constant 0 : index
    %9 = vector.load %arg4[%c0_4, %c0_5, %c0_6] : memref<1x1x256xf32, #tpu.memory_space<vmem>>, vector<1x1x256xf32>
    tpu.vector_store %arg4[%c0_4, %c0_5, %c0_6], %8 {strides = array<i32>} : memref<1x1x256xf32, #tpu.memory_space<vmem>>, vector<1x1x256xf32>,
    return
  }
  func.func @transform_0(%arg0: i32) -> (i32, i32) {
    %c0_i32 = arith.constant 0 : i32
    %c0_i32_0 = arith.constant 0 : i32
    return %arg0, %c0_i32 : i32, i32
  }
  func.func @transform_1(%arg0: i32) -> (i32, i32) {
    %c0_i32 = arith.constant 0 : i32
    %c0_i32_0 = arith.constant 0 : i32
    %c0_i32_1 = arith.constant 0 : i32
    return %c0_i32, %c0_i32_0 : i32, i32
  }
  func.func @transform_2(%arg0: i32) -> i32 {
    %c0_i32 = arith.constant 0 : i32
    %c0_i32_0 = arith.constant 0 : i32
    return %c0_i32 : i32
  }
  func.func @transform_3(%arg0: i32) -> (i32, i32, i32) {
    %c0_i32 = arith.constant 0 : i32
    %c0_i32_0 = arith.constant 0 : i32
    %c0_i32_1 = arith.constant 0 : i32
    return %arg0, %c0_i32, %c0_i32_0 : i32, i32, i32
  }
}

</mosaic_0001>

<llo_original>
// kernel: tpu_custom_call.1
$region0: #{tpu_custom_call.1}
  #allocation0 [shape = 'u32[]', space=smem, size = 0x4, offset = 0x4, fixed_abs, tag = 'smem constant byte address 0x4 - core index']
  #allocation1 [shape = 'u32[72,128]{1,0:T(1,128)}', space=vmem, size = 0x9000, scoped, tag = 'internal scratch']
  #allocation2 [shape = 'f32[1]{0:T(128)S(6)}', space=smem, size = 0x200, scoped, tag = 'scoped memory for tpu_custom_call.1']
  %s0 = inlined_call_operand.vmem [shape: f32[768,32], index: 0, kind: input, shape index: {}]
  %s1 = inlined_call_operand.vmem [shape: f32[1,32], index: 1, kind: input, shape index: {}]
  %s2 = inlined_call_operand.<no memory space> [shape: f32[1], index: 2, kind: input, shape index: {}]
  %s3 = inlined_call_operand.hbm [shape: f32[3,1,256], index: 3, kind: output, shape index: {}]
  %s4 = sld [smem:[#allocation0]]
  $region45: #{tpu_custom_call.1} parent=0
    _
  %s6 = ssub.s32 1, %s4
  %s7 = scalar_select 0, %s6, %s4
  %8 = sst [smem:[#allocation2]] %s2
  $region1: #{tpu_custom_call.1} parent=0
    #allocation3 [shape = 'u8[2048]{0}', space=vmem, size = 0x800, scoped, tag = 'output window, operand 0']
    #allocation4 [shape = 's32[2]{0}', space=sflag, size = 0x8, scoped, tag = 'scoped memory for tpu_custom_call.1']
    %9 = vsyncpa [#allocation4], 0
    %s10 = scalar_lea.sflag [#allocation4], 1
    %11 = vsyncpa %s10, 0
    loop: start=0, step=1, limit=5
    $region2: #{tpu_custom_call.1} parent=1 // loop_pre_header
      _
    $region3: #{tpu_custom_call.1} parent=1 // loop_header
      %s13 = sphi 0, %s17
      %p14 = scmp.ge.s32.totalorder %s13, 5
      %s23 = sphi 0, %s25
      %s26 = sphi 0, %s23
      %s27 = sphi 0, %s26
      %s43 = sphi 0, %s27
      %s47 = sphi 0, %s47
      %s49 = sphi 0, %s47
      %s50 = sphi 0, %s49
      %s64 = sphi 0, %s50
      %s68 = sphi 0, %s68
      %s70 = sphi 0, %s68
      %s71 = sphi 0, %s70
      %s85 = sphi 0, %s71
      %s91 = sphi 0, %s93
      %s94 = sphi 0, %s91
      %s95 = sphi 0, %s94
      %s111 = sphi 0, %s95
    $region4: #{tpu_custom_call.1} parent=1 // loop_header_branch
      %16 = sbr.rel (%p14) target = $region8
    $region5: #{tpu_custom_call.1} parent=1 // loop_body
      %s18 = ssub.s32 %s13, 1
      %s19 = ssub.s32 %s13, 2
      %s20 = sadd.s32 %s13, 1
      %s21 = ssub.s32 %s13, %s20
      %p22 = scmp.eq.s32.totalorder %s21, 0
      %s24 = sadd.s32 %s23, 1
      %s25 = scalar_select %p22, %s23, %s24
      %p28 = pneg %p22
      %p29 = scmp.eq.s32.totalorder %s13, 2
      %p30 = por %p28, %p29
      %p31 = scmp.ne.s32.totalorder %s23, %s26
      %p32 = scmp.eq.s32.totalorder %s13, 0
      %p33 = por %p31, %p32
      %p34 = scmp.ne.s32.totalorder %s23, %s26
      %p35 = scmp.eq.s32.totalorder %s18, 2
      %p36 = por %p34, %p35
      %p37 = scmp.ne.s32.totalorder %s26, %s27
      %p38 = scmp.eq.s32.totalorder %s18, 0
      %p39 = por %p37, %p38
      %p40 = scmp.ne.s32.totalorder %s26, %s27
      %p41 = scmp.eq.s32.totalorder %s19, 2
      %p42 = por %p40, %p41
      %p44 = scmp.ne.s32.totalorder %s27, %s43
      %p45 = scmp.eq.s32.totalorder %s19, 0
      %p46 = por %p44, %p45
      %s48 = sadd.s32 %s47, 1
      %p51 = scmp.eq.s32.totalorder %s13, 2
      %p52 = scmp.ne.s32.totalorder %s47, %s49
      %p53 = scmp.eq.s32.totalorder %s13, 0
      %p54 = por %p52, %p53
      %p55 = scmp.ne.s32.totalorder %s47, %s49
      %p56 = scmp.eq.s32.totalorder %s18, 2
      %p57 = por %p55, %p56
      %p58 = scmp.ne.s32.totalorder %s49, %s50
      %p59 = scmp.eq.s32.totalorder %s18, 0
      %p60 = por %p58, %p59
      %p61 = scmp.ne.s32.totalorder %s49, %s50
      %p62 = scmp.eq.s32.totalorder %s19, 2
      %p63 = por %p61, %p62
      %p65 = scmp.ne.s32.totalorder %s50, %s64
      %p66 = scmp.eq.s32.totalorder %s19, 0
      %p67 = por %p65, %p66
      %s69 = sadd.s32 %s68, 1
      %p72 = scmp.eq.s32.totalorder %s13, 2
      %p73 = scmp.ne.s32.totalorder %s68, %s70
      %p74 = scmp.eq.s32.totalorder %s13, 0
      %p75 = por %p73, %p74
      %p76 = scmp.ne.s32.totalorder %s68, %s70
      %p77 = scmp.eq.s32.totalorder %s18, 2
      %p78 = por %p76, %p77
      %p79 = scmp.ne.s32.totalorder %s70, %s71
      %p80 = scmp.eq.s32.totalorder %s18, 0
      %p81 = por %p79, %p80
      %p82 = scmp.ne.s32.totalorder %s70, %s71
      %p83 = scmp.eq.s32.totalorder %s19, 2
      %p84 = por %p82, %p83
      %p86 = scmp.ne.s32.totalorder %s71, %s85
      %p87 = scmp.eq.s32.totalorder %s19, 0
      %p88 = por %p86, %p87
      %s89 = ssub.s32 %s13, %s20
      %p90 = scmp.eq.s32.totalorder %s89, 0
      %s92 = sadd.s32 %s91, 1
      %s93 = scalar_select %p90, %s91, %s92
      %p96 = pneg %p90
      %p97 = scmp.eq.s32.totalorder %s13, 2
      %p98 = por %p96, %p97
      %p99 = scmp.ne.s32.totalorder %s91, %s94
      %p100 = scmp.eq.s32.totalorder %s13, 0
      %p101 = por %p99, %p100
      %p102 = scmp.ne.s32.totalorder %s91, %s94
      %p103 = scmp.eq.s32.totalorder %s18, 2
      %p104 = por %p102, %p103
      %p105 = scmp.ne.s32.totalorder %s94, %s95
      %p106 = scmp.eq.s32.totalorder %s18, 0
      %p107 = por %p105, %p106
      %p108 = scmp.ne.s32.totalorder %s94, %s95
      %p109 = scmp.eq.s32.totalorder %s19, 2
      %p110 = por %p108, %p109
      %p112 = scmp.ne.s32.totalorder %s95, %s111
      %p113 = scmp.eq.s32.totalorder %s19, 0
      %p114 = por %p112, %p113
      %p115 = scmp.le.s32.totalorder 1, %s13
      %p116 = scmp.lt.s32.totalorder %s13, 4
      %p117 = pnand %p115, %p116
      %p118 = pneg %p117
      // Predicated region
      $region9: #{tpu_custom_call.1} parent=5 // pred_check
        _
      $region10: #{tpu_custom_call.1} parent=5 // pred_check_branch
        %120 = sbr.rel (%p117) target = $region12
      $region11: #{tpu_custom_call.1} parent=5 // pred_region
        %s121 = ssub.s32 %s13, 1
        // Predicated region
        $region13: #{tpu_custom_call.1} parent=11 // pred_check
          %p122 = pneg %p60
        $region14: #{tpu_custom_call.1} parent=11 // pred_check_branch
          %124 = sbr.rel (%p122) target = $region16
        $region15: #{tpu_custom_call.1} parent=11 // pred_region
          _
        $region16: #{tpu_custom_call.1} parent=11 // pred_fallthru
          _
        // Predicated region
        $region17: #{tpu_custom_call.1} parent=11 // pred_check
          %p125 = pneg %p81
        $region18: #{tpu_custom_call.1} parent=11 // pred_check_branch
          %127 = sbr.rel (%p125) target = $region20
        $region19: #{tpu_custom_call.1} parent=11 // pred_region
          _
        $region20: #{tpu_custom_call.1} parent=11 // pred_fallthru
          _
      $region12: #{tpu_custom_call.1} parent=5 // pred_fallthru
        _
      %p128 = scmp.lt.s32.totalorder %s13, 3
      // Predicated region
      $region21: #{tpu_custom_call.1} parent=5 // pred_check
        %p129 = pneg %p128
      $region22: #{tpu_custom_call.1} parent=5 // pred_check_branch
        %131 = sbr.rel (%p129) target = $region24
      $region23: #{tpu_custom_call.1} parent=5 // pred_region
        // Predicated region
        $region25: #{tpu_custom_call.1} parent=23 // pred_check
          %p132 = pneg %p33
        $region26: #{tpu_custom_call.1} parent=23 // pred_check_branch
          %134 = sbr.rel (%p132) target = $region28
        $region27: #{tpu_custom_call.1} parent=23 // pred_region
          %s135 = smul.u32 32, %s13
          %p136 = scmp.lt.s32.totalorder %s135, 95
          %s137 = scalar_select %p136, %s135, 95
          %s138 = smul.addr %s137, 8
          %s139 = scalar_lea.vmem %s0, %s138
          %s140 = smul.u32 32, %s13
        $region28: #{tpu_custom_call.1} parent=23 // pred_fallthru
          _
      $region24: #{tpu_custom_call.1} parent=5 // pred_fallthru
        _
      %p141 = scmp.le.s32.totalorder 1, %s13
      %p142 = scmp.lt.s32.totalorder %s13, 4
      %p143 = pnand %p141, %p142
      %p144 = pneg %p143
      // Predicated region
      $region29: #{tpu_custom_call.1} parent=5 // pred_check
        _
      $region30: #{tpu_custom_call.1} parent=5 // pred_check_branch
        %146 = sbr.rel (%p143) target = $region32
      $region31: #{tpu_custom_call.1} parent=5 // pred_region
        %s147 = ssub.s32 %s13, 1
        %s148 = smul.u32 32, %s18
        %p149 = scmp.lt.s32.totalorder %s148, 95
        %s150 = scalar_select %p149, %s148, 95
        %s151 = smul.addr %s150, 8
        %s152 = scalar_lea.vmem %s0, %s151
        %p153 = pneg %p39
        %p154 = pneg %p36
        %p155 = pneg %p60
        %p156 = pneg %p57
        %p157 = pneg %p81
        %p158 = pneg %p78
        %p159 = pneg %p107
        %p160 = pneg %p104
        %s161 = sand.u32 %s94, 1
        %s162 = scalar_lea.sflag [#allocation4], %s161
        %s163 = sand.u32 %s94, 1
        %s164 = smul.addr %s163, 2
        %s165 = scalar_lea.vmem [#allocation3], %s164
        %s166 = smul.u32 32, %s18
        %p167 = scmp.lt.s32.totalorder %s166, 95
        %s168 = scalar_select %p167, %s166, 95
        %s169 = smul.addr %s168, 8
        %s170 = scalar_lea.vmem %s0, %s169
        %s171 = smul.u32 32, %s18
        %s172 = sld [smem:[#allocation2]]
        %v173 = vld [vmem:[%s170] sm:$0xff]
        %v174 = vld [vmem:[%s170 + $0x8] sm:$0xff]
        %v175 = vld [vmem:[%s170 + $0x10] sm:$0xff]
        %v176 = vld [vmem:[%s170 + $0x18] sm:$0xff]
        %v177 = vld [vmem:[%s170 + $0x20] sm:$0xff]
        %v178 = vld [vmem:[%s170 + $0x28] sm:$0xff]
        %v179 = vld [vmem:[%s170 + $0x30] sm:$0xff]
        %v180 = vld [vmem:[%s170 + $0x38] sm:$0xff]
        %v181 = vld [vmem:[%s170 + $0x40] sm:$0xff]
        %v182 = vld [vmem:[%s170 + $0x48] sm:$0xff]
        %v183 = vld [vmem:[%s170 + $0x50] sm:$0xff]
        %v184 = vld [vmem:[%s170 + $0x58] sm:$0xff]
        %v185 = vld [vmem:[%s170 + $0x60] sm:$0xff]
        %v186 = vld [vmem:[%s170 + $0x68] sm:$0xff]
        %v187 = vld [vmem:[%s170 + $0x70] sm:$0xff]
        %v188 = vld [vmem:[%s170 + $0x78] sm:$0xff]
        %v189 = vld [vmem:[%s170 + $0x80] sm:$0xff]
        %v190 = vld [vmem:[%s170 + $0x88] sm:$0xff]
        %v191 = vld [vmem:[%s170 + $0x90] sm:$0xff]
        %v192 = vld [vmem:[%s170 + $0x98] sm:$0xff]
        %v193 = vld [vmem:[%s170 + $0xa0] sm:$0xff]
        %v194 = vld [vmem:[%s170 + $0xa8] sm:$0xff]
        %v195 = vld [vmem:[%s170 + $0xb0] sm:$0xff]
        %v196 = vld [vmem:[%s170 + $0xb8] sm:$0xff]
        %v197 = vld [vmem:[%s170 + $0xc0] sm:$0xff]
        %v198 = vld [vmem:[%s170 + $0xc8] sm:$0xff]
        %v199 = vld [vmem:[%s170 + $0xd0] sm:$0xff]
        %v200 = vld [vmem:[%s170 + $0xd8] sm:$0xff]
        %v201 = vld [vmem:[%s170 + $0xe0] sm:$0xff]
        %v202 = vld [vmem:[%s170 + $0xe8] sm:$0xff]
        %v203 = vld [vmem:[%s170 + $0xf0] sm:$0xff]
        %v204 = vld [vmem:[%s170 + $0xf8] sm:$0xff]
        %v205 = vld [vmem:[%s1] sm:$0x1]
        %v207 = vperm.slane %v205, 0
        %v209 = vmul.f32 %v173, %v207
        %v210 = vmul.f32 %v174, %v207
        %v211 = vmul.f32 %v175, %v207
        %v212 = vmul.f32 %v176, %v207
        %v213 = vmul.f32 %v177, %v207
        %v214 = vmul.f32 %v178, %v207
        %v215 = vmul.f32 %v179, %v207
        %v216 = vmul.f32 %v180, %v207
        %v217 = vmul.f32 %v181, %v207
        %v218 = vmul.f32 %v182, %v207
        %v219 = vmul.f32 %v183, %v207
        %v220 = vmul.f32 %v184, %v207
        %v221 = vmul.f32 %v185, %v207
        %v222 = vmul.f32 %v186, %v207
        %v223 = vmul.f32 %v187, %v207
        %v224 = vmul.f32 %v188, %v207
        %v225 = vmul.f32 %v189, %v207
        %v226 = vmul.f32 %v190, %v207
        %v227 = vmul.f32 %v191, %v207
        %v228 = vmul.f32 %v192, %v207
        %v229 = vmul.f32 %v193, %v207
        %v230 = vmul.f32 %v194, %v207
        %v231 = vmul.f32 %v195, %v207
        %v232 = vmul.f32 %v196, %v207
        %v233 = vmul.f32 %v197, %v207
        %v234 = vmul.f32 %v198, %v207
        %v235 = vmul.f32 %v199, %v207
        %v236 = vmul.f32 %v200, %v207
        %v237 = vmul.f32 %v201, %v207
        %v238 = vmul.f32 %v202, %v207
        %v239 = vmul.f32 %v203, %v207
        %v240 = vmul.f32 %v204, %v207
        %vm241 = vcmask 261120
        %v242 = vsel %vm241, %v209, 0.0
        %243 = vadd.xlane.f32.xlu0 %v242
        %v244 = vpop.xlane.xlu0 %243
        %v245 = vsel %vm241, %v210, 0.0
        %246 = vadd.xlane.f32.xlu0 %v245
        %v247 = vpop.xlane.xlu0 %246
        %v248 = vsel %vm241, %v211, 0.0
        %249 = vadd.xlane.f32.xlu0 %v248
        %v250 = vpop.xlane.xlu0 %249
        %v251 = vsel %vm241, %v212, 0.0
        %252 = vadd.xlane.f32.xlu0 %v251
        %v253 = vpop.xlane.xlu0 %252
        %v254 = vsel %vm241, %v213, 0.0
        %255 = vadd.xlane.f32.xlu0 %v254
        %v256 = vpop.xlane.xlu0 %255
        %v257 = vsel %vm241, %v214, 0.0
        %258 = vadd.xlane.f32.xlu0 %v257
        %v259 = vpop.xlane.xlu0 %258
        %v260 = vsel %vm241, %v215, 0.0
        %261 = vadd.xlane.f32.xlu0 %v260
        %v262 = vpop.xlane.xlu0 %261
        %v263 = vsel %vm241, %v216, 0.0
        %264 = vadd.xlane.f32.xlu0 %v263
        %v265 = vpop.xlane.xlu0 %264
        %v266 = vsel %vm241, %v217, 0.0
        %267 = vadd.xlane.f32.xlu0 %v266
        %v268 = vpop.xlane.xlu0 %267
        %v269 = vsel %vm241, %v218, 0.0
        %270 = vadd.xlane.f32.xlu0 %v269
        %v271 = vpop.xlane.xlu0 %270
        %v272 = vsel %vm241, %v219, 0.0
        %273 = vadd.xlane.f32.xlu0 %v272
        %v274 = vpop.xlane.xlu0 %273
        %v275 = vsel %vm241, %v220, 0.0
        %276 = vadd.xlane.f32.xlu0 %v275
        %v277 = vpop.xlane.xlu0 %276
        %v278 = vsel %vm241, %v221, 0.0
        %279 = vadd.xlane.f32.xlu0 %v278
        %v280 = vpop.xlane.xlu0 %279
        %v281 = vsel %vm241, %v222, 0.0
        %282 = vadd.xlane.f32.xlu0 %v281
        %v283 = vpop.xlane.xlu0 %282
        %v284 = vsel %vm241, %v223, 0.0
        %285 = vadd.xlane.f32.xlu0 %v284
        %v286 = vpop.xlane.xlu0 %285
        %v287 = vsel %vm241, %v224, 0.0
        %288 = vadd.xlane.f32.xlu0 %v287
        %v289 = vpop.xlane.xlu0 %288
        %v290 = vsel %vm241, %v225, 0.0
        %291 = vadd.xlane.f32.xlu0 %v290
        %v292 = vpop.xlane.xlu0 %291
        %v293 = vsel %vm241, %v226, 0.0
        %294 = vadd.xlane.f32.xlu0 %v293
        %v295 = vpop.xlane.xlu0 %294
        %v296 = vsel %vm241, %v227, 0.0
        %297 = vadd.xlane.f32.xlu0 %v296
        %v298 = vpop.xlane.xlu0 %297
        %v299 = vsel %vm241, %v228, 0.0
        %300 = vadd.xlane.f32.xlu0 %v299
        %v301 = vpop.xlane.xlu0 %300
        %v302 = vsel %vm241, %v229, 0.0
        %303 = vadd.xlane.f32.xlu0 %v302
        %v304 = vpop.xlane.xlu0 %303
        %v305 = vsel %vm241, %v230, 0.0
        %306 = vadd.xlane.f32.xlu0 %v305
        %v307 = vpop.xlane.xlu0 %306
        %v308 = vsel %vm241, %v231, 0.0
        %309 = vadd.xlane.f32.xlu0 %v308
        %v310 = vpop.xlane.xlu0 %309
        %v311 = vsel %vm241, %v232, 0.0
        %312 = vadd.xlane.f32.xlu0 %v311
        %v313 = vpop.xlane.xlu0 %312
        %v314 = vsel %vm241, %v233, 0.0
        %315 = vadd.xlane.f32.xlu0 %v314
        %v316 = vpop.xlane.xlu0 %315
        %v317 = vsel %vm241, %v234, 0.0
        %318 = vadd.xlane.f32.xlu0 %v317
        %v319 = vpop.xlane.xlu0 %318
        %v320 = vsel %vm241, %v235, 0.0
        %321 = vadd.xlane.f32.xlu0 %v320
        %v322 = vpop.xlane.xlu0 %321
        %v323 = vsel %vm241, %v236, 0.0
        %324 = vadd.xlane.f32.xlu0 %v323
        %v325 = vpop.xlane.xlu0 %324
        %v326 = vsel %vm241, %v237, 0.0
        %327 = vadd.xlane.f32.xlu0 %v326
        %v328 = vpop.xlane.xlu0 %327
        %v329 = vsel %vm241, %v238, 0.0
        %330 = vadd.xlane.f32.xlu0 %v329
        %v331 = vpop.xlane.xlu0 %330
        %v332 = vsel %vm241, %v239, 0.0
        %333 = vadd.xlane.f32.xlu0 %v332
        %v334 = vpop.xlane.xlu0 %333
        %v335 = vsel %vm241, %v240, 0.0
        %336 = vadd.xlane.f32.xlu0 %v335
        %v337 = vpop.xlane.xlu0 %336
        %v338 = vstv %s172
        %v339 = vadd.f32 %v244, %v338
        %v340 = vadd.f32 %v247, %v338
        %v341 = vadd.f32 %v250, %v338
        %v342 = vadd.f32 %v253, %v338
        %v343 = vadd.f32 %v256, %v338
        %v344 = vadd.f32 %v259, %v338
        %v345 = vadd.f32 %v262, %v338
        %v346 = vadd.f32 %v265, %v338
        %v347 = vadd.f32 %v268, %v338
        %v348 = vadd.f32 %v271, %v338
        %v349 = vadd.f32 %v274, %v338
        %v350 = vadd.f32 %v277, %v338
        %v351 = vadd.f32 %v280, %v338
        %v352 = vadd.f32 %v283, %v338
        %v353 = vadd.f32 %v286, %v338
        %v354 = vadd.f32 %v289, %v338
        %v355 = vadd.f32 %v292, %v338
        %v356 = vadd.f32 %v295, %v338
        %v357 = vadd.f32 %v298, %v338
        %v358 = vadd.f32 %v301, %v338
        %v359 = vadd.f32 %v304, %v338
        %v360 = vadd.f32 %v307, %v338
        %v361 = vadd.f32 %v310, %v338
        %v362 = vadd.f32 %v313, %v338
        %v363 = vadd.f32 %v316, %v338
        %v364 = vadd.f32 %v319, %v338
        %v365 = vadd.f32 %v322, %v338
        %v366 = vadd.f32 %v325, %v338
        %v367 = vadd.f32 %v328, %v338
        %v368 = vadd.f32 %v331, %v338
        %v369 = vadd.f32 %v334, %v338
        %v370 = vadd.f32 %v337, %v338
        %v403 = vperm.slane %v339, 0
        %v404 = vperm.slane %v339, 1
        %v405 = vperm.slane %v339, 2
        %v406 = vperm.slane %v339, 3
        %v407 = vperm.slane %v339, 4
        %v408 = vperm.slane %v339, 5
        %v409 = vperm.slane %v339, 6
        %v410 = vperm.slane %v339, 7
        %v411 = vperm.slane %v340, 0
        %v412 = vperm.slane %v340, 1
        %v413 = vperm.slane %v340, 2
        %v414 = vperm.slane %v340, 3
        %v415 = vperm.slane %v340, 4
        %v416 = vperm.slane %v340, 5
        %v417 = vperm.slane %v340, 6
        %v418 = vperm.slane %v340, 7
        %v419 = vperm.slane %v341, 0
        %v420 = vperm.slane %v341, 1
        %v421 = vperm.slane %v341, 2
        %v422 = vperm.slane %v341, 3
        %v423 = vperm.slane %v341, 4
        %v424 = vperm.slane %v341, 5
        %v425 = vperm.slane %v341, 6
        %v426 = vperm.slane %v341, 7
        %v427 = vperm.slane %v342, 0
        %v428 = vperm.slane %v342, 1
        %v429 = vperm.slane %v342, 2
        %v430 = vperm.slane %v342, 3
        %v431 = vperm.slane %v342, 4
        %v432 = vperm.slane %v342, 5
        %v433 = vperm.slane %v342, 6
        %v434 = vperm.slane %v342, 7
        %v435 = vperm.slane %v343, 0
        %v436 = vperm.slane %v343, 1
        %v437 = vperm.slane %v343, 2
        %v438 = vperm.slane %v343, 3
        %v439 = vperm.slane %v343, 4
        %v440 = vperm.slane %v343, 5
        %v441 = vperm.slane %v343, 6
        %v442 = vperm.slane %v343, 7
        %v443 = vperm.slane %v344, 0
        %v444 = vperm.slane %v344, 1
        %v445 = vperm.slane %v344, 2
        %v446 = vperm.slane %v344, 3
        %v447 = vperm.slane %v344, 4
        %v448 = vperm.slane %v344, 5
        %v449 = vperm.slane %v344, 6
        %v450 = vperm.slane %v344, 7
        %v451 = vperm.slane %v345, 0
        %v452 = vperm.slane %v345, 1
        %v453 = vperm.slane %v345, 2
        %v454 = vperm.slane %v345, 3
        %v455 = vperm.slane %v345, 4
        %v456 = vperm.slane %v345, 5
        %v457 = vperm.slane %v345, 6
        %v458 = vperm.slane %v345, 7
        %v459 = vperm.slane %v346, 0
        %v460 = vperm.slane %v346, 1
        %v461 = vperm.slane %v346, 2
        %v462 = vperm.slane %v346, 3
        %v463 = vperm.slane %v346, 4
        %v464 = vperm.slane %v346, 5
        %v465 = vperm.slane %v346, 6
        %v466 = vperm.slane %v346, 7
        %v467 = vperm.slane %v347, 0
        %v468 = vperm.slane %v347, 1
        %v469 = vperm.slane %v347, 2
        %v470 = vperm.slane %v347, 3
        %v471 = vperm.slane %v347, 4
        %v472 = vperm.slane %v347, 5
        %v473 = vperm.slane %v347, 6
        %v474 = vperm.slane %v347, 7
        %v475 = vperm.slane %v348, 0
        %v476 = vperm.slane %v348, 1
        %v477 = vperm.slane %v348, 2
        %v478 = vperm.slane %v348, 3
        %v479 = vperm.slane %v348, 4
        %v480 = vperm.slane %v348, 5
        %v481 = vperm.slane %v348, 6
        %v482 = vperm.slane %v348, 7
        %v483 = vperm.slane %v349, 0
        %v484 = vperm.slane %v349, 1
        %v485 = vperm.slane %v349, 2
        %v486 = vperm.slane %v349, 3
        %v487 = vperm.slane %v349, 4
        %v488 = vperm.slane %v349, 5
        %v489 = vperm.slane %v349, 6
        %v490 = vperm.slane %v349, 7
        %v491 = vperm.slane %v350, 0
        %v492 = vperm.slane %v350, 1
        %v493 = vperm.slane %v350, 2
        %v494 = vperm.slane %v350, 3
        %v495 = vperm.slane %v350, 4
        %v496 = vperm.slane %v350, 5
        %v497 = vperm.slane %v350, 6
        %v498 = vperm.slane %v350, 7
        %v499 = vperm.slane %v351, 0
        %v500 = vperm.slane %v351, 1
        %v501 = vperm.slane %v351, 2
        %v502 = vperm.slane %v351, 3
        %v503 = vperm.slane %v351, 4
        %v504 = vperm.slane %v351, 5
        %v505 = vperm.slane %v351, 6
        %v506 = vperm.slane %v351, 7
        %v507 = vperm.slane %v352, 0
        %v508 = vperm.slane %v352, 1
        %v509 = vperm.slane %v352, 2
        %v510 = vperm.slane %v352, 3
        %v511 = vperm.slane %v352, 4
        %v512 = vperm.slane %v352, 5
        %v513 = vperm.slane %v352, 6
        %v514 = vperm.slane %v352, 7
        %v515 = vperm.slane %v353, 0
        %v516 = vperm.slane %v353, 1
        %v517 = vperm.slane %v353, 2
        %v518 = vperm.slane %v353, 3
        %v519 = vperm.slane %v353, 4
        %v520 = vperm.slane %v353, 5
        %v521 = vperm.slane %v353, 6
        %v522 = vperm.slane %v353, 7
        %v523 = vperm.slane %v354, 0
        %v524 = vperm.slane %v354, 1
        %v525 = vperm.slane %v354, 2
        %v526 = vperm.slane %v354, 3
        %v527 = vperm.slane %v354, 4
        %v528 = vperm.slane %v354, 5
        %v529 = vperm.slane %v354, 6
        %v530 = vperm.slane %v354, 7
        %v531 = vperm.slane %v355, 0
        %v532 = vperm.slane %v355, 1
        %v533 = vperm.slane %v355, 2
        %v534 = vperm.slane %v355, 3
        %v535 = vperm.slane %v355, 4
        %v536 = vperm.slane %v355, 5
        %v537 = vperm.slane %v355, 6
        %v538 = vperm.slane %v355, 7
        %v539 = vperm.slane %v356, 0
        %v540 = vperm.slane %v356, 1
        %v541 = vperm.slane %v356, 2
        %v542 = vperm.slane %v356, 3
        %v543 = vperm.slane %v356, 4
        %v544 = vperm.slane %v356, 5
        %v545 = vperm.slane %v356, 6
        %v546 = vperm.slane %v356, 7
        %v547 = vperm.slane %v357, 0
        %v548 = vperm.slane %v357, 1
        %v549 = vperm.slane %v357, 2
        %v550 = vperm.slane %v357, 3
        %v551 = vperm.slane %v357, 4
        %v552 = vperm.slane %v357, 5
        %v553 = vperm.slane %v357, 6
        %v554 = vperm.slane %v357, 7
        %v555 = vperm.slane %v358, 0
        %v556 = vperm.slane %v358, 1
        %v557 = vperm.slane %v358, 2
        %v558 = vperm.slane %v358, 3
        %v559 = vperm.slane %v358, 4
        %v560 = vperm.slane %v358, 5
        %v561 = vperm.slane %v358, 6
        %v562 = vperm.slane %v358, 7
        %v563 = vperm.slane %v359, 0
        %v564 = vperm.slane %v359, 1
        %v565 = vperm.slane %v359, 2
        %v566 = vperm.slane %v359, 3
        %v567 = vperm.slane %v359, 4
        %v568 = vperm.slane %v359, 5
        %v569 = vperm.slane %v359, 6
        %v570 = vperm.slane %v359, 7
        %v571 = vperm.slane %v360, 0
        %v572 = vperm.slane %v360, 1
        %v573 = vperm.slane %v360, 2
        %v574 = vperm.slane %v360, 3
        %v575 = vperm.slane %v360, 4
        %v576 = vperm.slane %v360, 5
        %v577 = vperm.slane %v360, 6
        %v578 = vperm.slane %v360, 7
        %v579 = vperm.slane %v361, 0
        %v580 = vperm.slane %v361, 1
        %v581 = vperm.slane %v361, 2
        %v582 = vperm.slane %v361, 3
        %v583 = vperm.slane %v361, 4
        %v584 = vperm.slane %v361, 5
        %v585 = vperm.slane %v361, 6
        %v586 = vperm.slane %v361, 7
        %v587 = vperm.slane %v362, 0
        %v588 = vperm.slane %v362, 1
        %v589 = vperm.slane %v362, 2
        %v590 = vperm.slane %v362, 3
        %v591 = vperm.slane %v362, 4
        %v592 = vperm.slane %v362, 5
        %v593 = vperm.slane %v362, 6
        %v594 = vperm.slane %v362, 7
        %v595 = vperm.slane %v363, 0
        %v596 = vperm.slane %v363, 1
        %v597 = vperm.slane %v363, 2
        %v598 = vperm.slane %v363, 3
        %v599 = vperm.slane %v363, 4
        %v600 = vperm.slane %v363, 5
        %v601 = vperm.slane %v363, 6
        %v602 = vperm.slane %v363, 7
        %v603 = vperm.slane %v364, 0
        %v604 = vperm.slane %v364, 1
        %v605 = vperm.slane %v364, 2
        %v606 = vperm.slane %v364, 3
        %v607 = vperm.slane %v364, 4
        %v608 = vperm.slane %v364, 5
        %v609 = vperm.slane %v364, 6
        %v610 = vperm.slane %v364, 7
        %v611 = vperm.slane %v365, 0
        %v612 = vperm.slane %v365, 1
        %v613 = vperm.slane %v365, 2
        %v614 = vperm.slane %v365, 3
        %v615 = vperm.slane %v365, 4
        %v616 = vperm.slane %v365, 5
        %v617 = vperm.slane %v365, 6
        %v618 = vperm.slane %v365, 7
        %v619 = vperm.slane %v366, 0
        %v620 = vperm.slane %v366, 1
        %v621 = vperm.slane %v366, 2
        %v622 = vperm.slane %v366, 3
        %v623 = vperm.slane %v366, 4
        %v624 = vperm.slane %v366, 5
        %v625 = vperm.slane %v366, 6
        %v626 = vperm.slane %v366, 7
        %v627 = vperm.slane %v367, 0
        %v628 = vperm.slane %v367, 1
        %v629 = vperm.slane %v367, 2
        %v630 = vperm.slane %v367, 3
        %v631 = vperm.slane %v367, 4
        %v632 = vperm.slane %v367, 5
        %v633 = vperm.slane %v367, 6
        %v634 = vperm.slane %v367, 7
        %v635 = vperm.slane %v368, 0
        %v636 = vperm.slane %v368, 1
        %v637 = vperm.slane %v368, 2
        %v638 = vperm.slane %v368, 3
        %v639 = vperm.slane %v368, 4
        %v640 = vperm.slane %v368, 5
        %v641 = vperm.slane %v368, 6
        %v642 = vperm.slane %v368, 7
        %v643 = vperm.slane %v369, 0
        %v644 = vperm.slane %v369, 1
        %v645 = vperm.slane %v369, 2
        %v646 = vperm.slane %v369, 3
        %v647 = vperm.slane %v369, 4
        %v648 = vperm.slane %v369, 5
        %v649 = vperm.slane %v369, 6
        %v650 = vperm.slane %v369, 7
        %v651 = vperm.slane %v370, 0
        %v652 = vperm.slane %v370, 1
        %v653 = vperm.slane %v370, 2
        %v654 = vperm.slane %v370, 3
        %v655 = vperm.slane %v370, 4
        %v656 = vperm.slane %v370, 5
        %v657 = vperm.slane %v370, 6
        %v658 = vperm.slane %v370, 7
        %659 = vst [vmem:[#allocation1] ss:$9 sm:$0xff] %v403
        %s660 = scalar_lea.vmem [#allocation1], 1
        %661 = vst [vmem:[%s660] ss:$9 sm:$0xff] %v404
        %s662 = scalar_lea.vmem [#allocation1], 2
        %663 = vst [vmem:[%s662] ss:$9 sm:$0xff] %v405
        %s664 = scalar_lea.vmem [#allocation1], 3
        %665 = vst [vmem:[%s664] ss:$9 sm:$0xff] %v406
        %s666 = scalar_lea.vmem [#allocation1], 4
        %667 = vst [vmem:[%s666] ss:$9 sm:$0xff] %v407
        %s668 = scalar_lea.vmem [#allocation1], 5
        %669 = vst [vmem:[%s668] ss:$9 sm:$0xff] %v408
        %s670 = scalar_lea.vmem [#allocation1], 6
        %671 = vst [vmem:[%s670] ss:$9 sm:$0xff] %v409
        %s672 = scalar_lea.vmem [#allocation1], 7
        %673 = vst [vmem:[%s672] ss:$9 sm:$0xff] %v410
        %v674 = vld [vmem:[#allocation1] sm:$0xff]
        %675 = vst [vmem:[#allocation1] ss:$9 sm:$0xff] %v411
        %676 = vst [vmem:[%s660] ss:$9 sm:$0xff] %v412
        %677 = vst [vmem:[%s662] ss:$9 sm:$0xff] %v413
        %678 = vst [vmem:[%s664] ss:$9 sm:$0xff] %v414
        %679 = vst [vmem:[%s666] ss:$9 sm:$0xff] %v415
        %680 = vst [vmem:[%s668] ss:$9 sm:$0xff] %v416
        %681 = vst [vmem:[%s670] ss:$9 sm:$0xff] %v417
        %682 = vst [vmem:[%s672] ss:$9 sm:$0xff] %v418
        %v683 = vld [vmem:[#allocation1] sm:$0xff]
        %684 = vst [vmem:[#allocation1] ss:$9 sm:$0xff] %v419
        %685 = vst [vmem:[%s660] ss:$9 sm:$0xff] %v420
        %686 = vst [vmem:[%s662] ss:$9 sm:$0xff] %v421
        %687 = vst [vmem:[%s664] ss:$9 sm:$0xff] %v422
        %688 = vst [vmem:[%s666] ss:$9 sm:$0xff] %v423
        %689 = vst [vmem:[%s668] ss:$9 sm:$0xff] %v424
        %690 = vst [vmem:[%s670] ss:$9 sm:$0xff] %v425
        %691 = vst [vmem:[%s672] ss:$9 sm:$0xff] %v426
        %v692 = vld [vmem:[#allocation1] sm:$0xff]
        %693 = vst [vmem:[#allocation1] ss:$9 sm:$0xff] %v427
        %694 = vst [vmem:[%s660] ss:$9 sm:$0xff] %v428
        %695 = vst [vmem:[%s662] ss:$9 sm:$0xff] %v429
        %696 = vst [vmem:[%s664] ss:$9 sm:$0xff] %v430
        %697 = vst [vmem:[%s666] ss:$9 sm:$0xff] %v431
        %698 = vst [vmem:[%s668] ss:$9 sm:$0xff] %v432
        %699 = vst [vmem:[%s670] ss:$9 sm:$0xff] %v433
        %700 = vst [vmem:[%s672] ss:$9 sm:$0xff] %v434
        %v701 = vld [vmem:[#allocation1] sm:$0xff]
        %702 = vst [vmem:[#allocation1] ss:$9 sm:$0xff] %v435
        %703 = vst [vmem:[%s660] ss:$9 sm:$0xff] %v436
        %704 = vst [vmem:[%s662] ss:$9 sm:$0xff] %v437
        %705 = vst [vmem:[%s664] ss:$9 sm:$0xff] %v438
        %706 = vst [vmem:[%s666] ss:$9 sm:$0xff] %v439
        %707 = vst [vmem:[%s668] ss:$9 sm:$0xff] %v440
        %708 = vst [vmem:[%s670] ss:$9 sm:$0xff] %v441
        %709 = vst [vmem:[%s672] ss:$9 sm:$0xff] %v442
        %v710 = vld [vmem:[#allocation1] sm:$0xff]
        %711 = vst [vmem:[#allocation1] ss:$9 sm:$0xff] %v443
        %712 = vst [vmem:[%s660] ss:$9 sm:$0xff] %v444
        %713 = vst [vmem:[%s662] ss:$9 sm:$0xff] %v445
        %714 = vst [vmem:[%s664] ss:$9 sm:$0xff] %v446
        %715 = vst [vmem:[%s666] ss:$9 sm:$0xff] %v447
        %716 = vst [vmem:[%s668] ss:$9 sm:$0xff] %v448
        %717 = vst [vmem:[%s670] ss:$9 sm:$0xff] %v449
        %718 = vst [vmem:[%s672] ss:$9 sm:$0xff] %v450
        %v719 = vld [vmem:[#allocation1] sm:$0xff]
        %720 = vst [vmem:[#allocation1] ss:$9 sm:$0xff] %v451
        %721 = vst [vmem:[%s660] ss:$9 sm:$0xff] %v452
        %722 = vst [vmem:[%s662] ss:$9 sm:$0xff] %v453
        %723 = vst [vmem:[%s664] ss:$9 sm:$0xff] %v454
        %724 = vst [vmem:[%s666] ss:$9 sm:$0xff] %v455
        %725 = vst [vmem:[%s668] ss:$9 sm:$0xff] %v456
        %726 = vst [vmem:[%s670] ss:$9 sm:$0xff] %v457
        %727 = vst [vmem:[%s672] ss:$9 sm:$0xff] %v458
        %v728 = vld [vmem:[#allocation1] sm:$0xff]
        %729 = vst [vmem:[#allocation1] ss:$9 sm:$0xff] %v459
        %730 = vst [vmem:[%s660] ss:$9 sm:$0xff] %v460
        %731 = vst [vmem:[%s662] ss:$9 sm:$0xff] %v461
        %732 = vst [vmem:[%s664] ss:$9 sm:$0xff] %v462
        %733 = vst [vmem:[%s666] ss:$9 sm:$0xff] %v463
        %734 = vst [vmem:[%s668] ss:$9 sm:$0xff] %v464
        %735 = vst [vmem:[%s670] ss:$9 sm:$0xff] %v465
        %736 = vst [vmem:[%s672] ss:$9 sm:$0xff] %v466
        %v737 = vld [vmem:[#allocation1] sm:$0xff]
        %738 = vst [vmem:[#allocation1] ss:$9 sm:$0xff] %v467
        %739 = vst [vmem:[%s660] ss:$9 sm:$0xff] %v468
        %740 = vst [vmem:[%s662] ss:$9 sm:$0xff] %v469
        %741 = vst [vmem:[%s664] ss:$9 sm:$0xff] %v470
        %742 = vst [vmem:[%s666] ss:$9 sm:$0xff] %v471
        %743 = vst [vmem:[%s668] ss:$9 sm:$0xff] %v472
        %744 = vst [vmem:[%s670] ss:$9 sm:$0xff] %v473
        %745 = vst [vmem:[%s672] ss:$9 sm:$0xff] %v474
        %v746 = vld [vmem:[#allocation1] sm:$0xff]
        %747 = vst [vmem:[#allocation1] ss:$9 sm:$0xff] %v475
        %748 = vst [vmem:[%s660] ss:$9 sm:$0xff] %v476
        %749 = vst [vmem:[%s662] ss:$9 sm:$0xff] %v477
        %750 = vst [vmem:[%s664] ss:$9 sm:$0xff] %v478
        %751 = vst [vmem:[%s666] ss:$9 sm:$0xff] %v479
        %752 = vst [vmem:[%s668] ss:$9 sm:$0xff] %v480
        %753 = vst [vmem:[%s670] ss:$9 sm:$0xff] %v481
        %754 = vst [vmem:[%s672] ss:$9 sm:$0xff] %v482
        %v755 = vld [vmem:[#allocation1] sm:$0xff]
        %756 = vst [vmem:[#allocation1] ss:$9 sm:$0xff] %v483
        %757 = vst [vmem:[%s660] ss:$9 sm:$0xff] %v484
        %758 = vst [vmem:[%s662] ss:$9 sm:$0xff] %v485
        %759 = vst [vmem:[%s664] ss:$9 sm:$0xff] %v486
        %760 = vst [vmem:[%s666] ss:$9 sm:$0xff] %v487
        %761 = vst [vmem:[%s668] ss:$9 sm:$0xff] %v488
        %762 = vst [vmem:[%s670] ss:$9 sm:$0xff] %v489
        %763 = vst [vmem:[%s672] ss:$9 sm:$0xff] %v490
        %v764 = vld [vmem:[#allocation1] sm:$0xff]
        %765 = vst [vmem:[#allocation1] ss:$9 sm:$0xff] %v491
        %766 = vst [vmem:[%s660] ss:$9 sm:$0xff] %v492
        %767 = vst [vmem:[%s662] ss:$9 sm:$0xff] %v493
        %768 = vst [vmem:[%s664] ss:$9 sm:$0xff] %v494
        %769 = vst [vmem:[%s666] ss:$9 sm:$0xff] %v495
        %770 = vst [vmem:[%s668] ss:$9 sm:$0xff] %v496
        %771 = vst [vmem:[%s670] ss:$9 sm:$0xff] %v497
        %772 = vst [vmem:[%s672] ss:$9 sm:$0xff] %v498
        %v773 = vld [vmem:[#allocation1] sm:$0xff]
        %774 = vst [vmem:[#allocation1] ss:$9 sm:$0xff] %v499
        %775 = vst [vmem:[%s660] ss:$9 sm:$0xff] %v500
        %776 = vst [vmem:[%s662] ss:$9 sm:$0xff] %v501
        %777 = vst [vmem:[%s664] ss:$9 sm:$0xff] %v502
        %778 = vst [vmem:[%s666] ss:$9 sm:$0xff] %v503
        %779 = vst [vmem:[%s668] ss:$9 sm:$0xff] %v504
        %780 = vst [vmem:[%s670] ss:$9 sm:$0xff] %v505
        %781 = vst [vmem:[%s672] ss:$9 sm:$0xff] %v506
        %v782 = vld [vmem:[#allocation1] sm:$0xff]
        %783 = vst [vmem:[#allocation1] ss:$9 sm:$0xff] %v507
        %784 = vst [vmem:[%s660] ss:$9 sm:$0xff] %v508
        %785 = vst [vmem:[%s662] ss:$9 sm:$0xff] %v509
        %786 = vst [vmem:[%s664] ss:$9 sm:$0xff] %v510
        %787 = vst [vmem:[%s666] ss:$9 sm:$0xff] %v511
        %788 = vst [vmem:[%s668] ss:$9 sm:$0xff] %v512
        %789 = vst [vmem:[%s670] ss:$9 sm:$0xff] %v513
        %790 = vst [vmem:[%s672] ss:$9 sm:$0xff] %v514
        %v791 = vld [vmem:[#allocation1] sm:$0xff]
        %792 = vst [vmem:[#allocation1] ss:$9 sm:$0xff] %v515
        %793 = vst [vmem:[%s660] ss:$9 sm:$0xff] %v516
        %794 = vst [vmem:[%s662] ss:$9 sm:$0xff] %v517
        %795 = vst [vmem:[%s664] ss:$9 sm:$0xff] %v518
        %796 = vst [vmem:[%s666] ss:$9 sm:$0xff] %v519
        %797 = vst [vmem:[%s668] ss:$9 sm:$0xff] %v520
        %798 = vst [vmem:[%s670] ss:$9 sm:$0xff] %v521
        %799 = vst [vmem:[%s672] ss:$9 sm:$0xff] %v522
        %v800 = vld [vmem:[#allocation1] sm:$0xff]
        %801 = vst [vmem:[#allocation1] ss:$9 sm:$0xff] %v523
        %802 = vst [vmem:[%s660] ss:$9 sm:$0xff] %v524
        %803 = vst [vmem:[%s662] ss:$9 sm:$0xff] %v525
        %804 = vst [vmem:[%s664] ss:$9 sm:$0xff] %v526
        %805 = vst [vmem:[%s666] ss:$9 sm:$0xff] %v527
        %806 = vst [vmem:[%s668] ss:$9 sm:$0xff] %v528
        %807 = vst [vmem:[%s670] ss:$9 sm:$0xff] %v529
        %808 = vst [vmem:[%s672] ss:$9 sm:$0xff] %v530
        %v809 = vld [vmem:[#allocation1] sm:$0xff]
        %810 = vst [vmem:[#allocation1] ss:$9 sm:$0xff] %v531
        %811 = vst [vmem:[%s660] ss:$9 sm:$0xff] %v532
        %812 = vst [vmem:[%s662] ss:$9 sm:$0xff] %v533
        %813 = vst [vmem:[%s664] ss:$9 sm:$0xff] %v534
        %814 = vst [vmem:[%s666] ss:$9 sm:$0xff] %v535
        %815 = vst [vmem:[%s668] ss:$9 sm:$0xff] %v536
        %816 = vst [vmem:[%s670] ss:$9 sm:$0xff] %v537
        %817 = vst [vmem:[%s672] ss:$9 sm:$0xff] %v538
        %v818 = vld [vmem:[#allocation1] sm:$0xff]
        %819 = vst [vmem:[#allocation1] ss:$9 sm:$0xff] %v539
        %820 = vst [vmem:[%s660] ss:$9 sm:$0xff] %v540
        %821 = vst [vmem:[%s662] ss:$9 sm:$0xff] %v541
        %822 = vst [vmem:[%s664] ss:$9 sm:$0xff] %v542
        %823 = vst [vmem:[%s666] ss:$9 sm:$0xff] %v543
        %824 = vst [vmem:[%s668] ss:$9 sm:$0xff] %v544
        %825 = vst [vmem:[%s670] ss:$9 sm:$0xff] %v545
        %826 = vst [vmem:[%s672] ss:$9 sm:$0xff] %v546
        %v827 = vld [vmem:[#allocation1] sm:$0xff]
        %828 = vst [vmem:[#allocation1] ss:$9 sm:$0xff] %v547
        %829 = vst [vmem:[%s660] ss:$9 sm:$0xff] %v548
        %830 = vst [vmem:[%s662] ss:$9 sm:$0xff] %v549
        %831 = vst [vmem:[%s664] ss:$9 sm:$0xff] %v550
        %832 = vst [vmem:[%s666] ss:$9 sm:$0xff] %v551
        %833 = vst [vmem:[%s668] ss:$9 sm:$0xff] %v552
        %834 = vst [vmem:[%s670] ss:$9 sm:$0xff] %v553
        %835 = vst [vmem:[%s672] ss:$9 sm:$0xff] %v554
        %v836 = vld [vmem:[#allocation1] sm:$0xff]
        %837 = vst [vmem:[#allocation1] ss:$9 sm:$0xff] %v555
        %838 = vst [vmem:[%s660] ss:$9 sm:$0xff] %v556
        %839 = vst [vmem:[%s662] ss:$9 sm:$0xff] %v557
        %840 = vst [vmem:[%s664] ss:$9 sm:$0xff] %v558
        %841 = vst [vmem:[%s666] ss:$9 sm:$0xff] %v559
        %842 = vst [vmem:[%s668] ss:$9 sm:$0xff] %v560
        %843 = vst [vmem:[%s670] ss:$9 sm:$0xff] %v561
        %844 = vst [vmem:[%s672] ss:$9 sm:$0xff] %v562
        %v845 = vld [vmem:[#allocation1] sm:$0xff]
        %846 = vst [vmem:[#allocation1] ss:$9 sm:$0xff] %v563
        %847 = vst [vmem:[%s660] ss:$9 sm:$0xff] %v564
        %848 = vst [vmem:[%s662] ss:$9 sm:$0xff] %v565
        %849 = vst [vmem:[%s664] ss:$9 sm:$0xff] %v566
        %850 = vst [vmem:[%s666] ss:$9 sm:$0xff] %v567
        %851 = vst [vmem:[%s668] ss:$9 sm:$0xff] %v568
        %852 = vst [vmem:[%s670] ss:$9 sm:$0xff] %v569
        %853 = vst [vmem:[%s672] ss:$9 sm:$0xff] %v570
        %v854 = vld [vmem:[#allocation1] sm:$0xff]
        %855 = vst [vmem:[#allocation1] ss:$9 sm:$0xff] %v571
        %856 = vst [vmem:[%s660] ss:$9 sm:$0xff] %v572
        %857 = vst [vmem:[%s662] ss:$9 sm:$0xff] %v573
        %858 = vst [vmem:[%s664] ss:$9 sm:$0xff] %v574
        %859 = vst [vmem:[%s666] ss:$9 sm:$0xff] %v575
        %860 = vst [vmem:[%s668] ss:$9 sm:$0xff] %v576
        %861 = vst [vmem:[%s670] ss:$9 sm:$0xff] %v577
        %862 = vst [vmem:[%s672] ss:$9 sm:$0xff] %v578
        %v863 = vld [vmem:[#allocation1] sm:$0xff]
        %864 = vst [vmem:[#allocation1] ss:$9 sm:$0xff] %v579
        %865 = vst [vmem:[%s660] ss:$9 sm:$0xff] %v580
        %866 = vst [vmem:[%s662] ss:$9 sm:$0xff] %v581
        %867 = vst [vmem:[%s664] ss:$9 sm:$0xff] %v582
        %868 = vst [vmem:[%s666] ss:$9 sm:$0xff] %v583
        %869 = vst [vmem:[%s668] ss:$9 sm:$0xff] %v584
        %870 = vst [vmem:[%s670] ss:$9 sm:$0xff] %v585
        %871 = vst [vmem:[%s672] ss:$9 sm:$0xff] %v586
        %v872 = vld [vmem:[#allocation1] sm:$0xff]
        %873 = vst [vmem:[#allocation1] ss:$9 sm:$0xff] %v587
        %874 = vst [vmem:[%s660] ss:$9 sm:$0xff] %v588
        %875 = vst [vmem:[%s662] ss:$9 sm:$0xff] %v589
        %876 = vst [vmem:[%s664] ss:$9 sm:$0xff] %v590
        %877 = vst [vmem:[%s666] ss:$9 sm:$0xff] %v591
        %878 = vst [vmem:[%s668] ss:$9 sm:$0xff] %v592
        %879 = vst [vmem:[%s670] ss:$9 sm:$0xff] %v593
        %880 = vst [vmem:[%s672] ss:$9 sm:$0xff] %v594
        %v881 = vld [vmem:[#allocation1] sm:$0xff]
        %882 = vst [vmem:[#allocation1] ss:$9 sm:$0xff] %v595
        %883 = vst [vmem:[%s660] ss:$9 sm:$0xff] %v596
        %884 = vst [vmem:[%s662] ss:$9 sm:$0xff] %v597
        %885 = vst [vmem:[%s664] ss:$9 sm:$0xff] %v598
        %886 = vst [vmem:[%s666] ss:$9 sm:$0xff] %v599
        %887 = vst [vmem:[%s668] ss:$9 sm:$0xff] %v600
        %888 = vst [vmem:[%s670] ss:$9 sm:$0xff] %v601
        %889 = vst [vmem:[%s672] ss:$9 sm:$0xff] %v602
        %v890 = vld [vmem:[#allocation1] sm:$0xff]
        %891 = vst [vmem:[#allocation1] ss:$9 sm:$0xff] %v603
        %892 = vst [vmem:[%s660] ss:$9 sm:$0xff] %v604
        %893 = vst [vmem:[%s662] ss:$9 sm:$0xff] %v605
        %894 = vst [vmem:[%s664] ss:$9 sm:$0xff] %v606
        %895 = vst [vmem:[%s666] ss:$9 sm:$0xff] %v607
        %896 = vst [vmem:[%s668] ss:$9 sm:$0xff] %v608
        %897 = vst [vmem:[%s670] ss:$9 sm:$0xff] %v609
        %898 = vst [vmem:[%s672] ss:$9 sm:$0xff] %v610
        %v899 = vld [vmem:[#allocation1] sm:$0xff]
        %900 = vst [vmem:[#allocation1] ss:$9 sm:$0xff] %v611
        %901 = vst [vmem:[%s660] ss:$9 sm:$0xff] %v612
        %902 = vst [vmem:[%s662] ss:$9 sm:$0xff] %v613
        %903 = vst [vmem:[%s664] ss:$9 sm:$0xff] %v614
        %904 = vst [vmem:[%s666] ss:$9 sm:$0xff] %v615
        %905 = vst [vmem:[%s668] ss:$9 sm:$0xff] %v616
        %906 = vst [vmem:[%s670] ss:$9 sm:$0xff] %v617
        %907 = vst [vmem:[%s672] ss:$9 sm:$0xff] %v618
        %v908 = vld [vmem:[#allocation1] sm:$0xff]
        %909 = vst [vmem:[#allocation1] ss:$9 sm:$0xff] %v619
        %910 = vst [vmem:[%s660] ss:$9 sm:$0xff] %v620
        %911 = vst [vmem:[%s662] ss:$9 sm:$0xff] %v621
        %912 = vst [vmem:[%s664] ss:$9 sm:$0xff] %v622
        %913 = vst [vmem:[%s666] ss:$9 sm:$0xff] %v623
        %914 = vst [vmem:[%s668] ss:$9 sm:$0xff] %v624
        %915 = vst [vmem:[%s670] ss:$9 sm:$0xff] %v625
        %916 = vst [vmem:[%s672] ss:$9 sm:$0xff] %v626
        %v917 = vld [vmem:[#allocation1] sm:$0xff]
        %918 = vst [vmem:[#allocation1] ss:$9 sm:$0xff] %v627
        %919 = vst [vmem:[%s660] ss:$9 sm:$0xff] %v628
        %920 = vst [vmem:[%s662] ss:$9 sm:$0xff] %v629
        %921 = vst [vmem:[%s664] ss:$9 sm:$0xff] %v630
        %922 = vst [vmem:[%s666] ss:$9 sm:$0xff] %v631
        %923 = vst [vmem:[%s668] ss:$9 sm:$0xff] %v632
        %924 = vst [vmem:[%s670] ss:$9 sm:$0xff] %v633
        %925 = vst [vmem:[%s672] ss:$9 sm:$0xff] %v634
        %v926 = vld [vmem:[#allocation1] sm:$0xff]
        %927 = vst [vmem:[#allocation1] ss:$9 sm:$0xff] %v635
        %928 = vst [vmem:[%s660] ss:$9 sm:$0xff] %v636
        %929 = vst [vmem:[%s662] ss:$9 sm:$0xff] %v637
        %930 = vst [vmem:[%s664] ss:$9 sm:$0xff] %v638
        %931 = vst [vmem:[%s666] ss:$9 sm:$0xff] %v639
        %932 = vst [vmem:[%s668] ss:$9 sm:$0xff] %v640
        %933 = vst [vmem:[%s670] ss:$9 sm:$0xff] %v641
        %934 = vst [vmem:[%s672] ss:$9 sm:$0xff] %v642
        %v935 = vld [vmem:[#allocation1] sm:$0xff]
        %936 = vst [vmem:[#allocation1] ss:$9 sm:$0xff] %v643
        %937 = vst [vmem:[%s660] ss:$9 sm:$0xff] %v644
        %938 = vst [vmem:[%s662] ss:$9 sm:$0xff] %v645
        %939 = vst [vmem:[%s664] ss:$9 sm:$0xff] %v646
        %940 = vst [vmem:[%s666] ss:$9 sm:$0xff] %v647
        %941 = vst [vmem:[%s668] ss:$9 sm:$0xff] %v648
        %942 = vst [vmem:[%s670] ss:$9 sm:$0xff] %v649
        %943 = vst [vmem:[%s672] ss:$9 sm:$0xff] %v650
        %v944 = vld [vmem:[#allocation1] sm:$0xff]
        %945 = vst [vmem:[#allocation1] ss:$9 sm:$0xff] %v651
        %946 = vst [vmem:[%s660] ss:$9 sm:$0xff] %v652
        %947 = vst [vmem:[%s662] ss:$9 sm:$0xff] %v653
        %948 = vst [vmem:[%s664] ss:$9 sm:$0xff] %v654
        %949 = vst [vmem:[%s666] ss:$9 sm:$0xff] %v655
        %950 = vst [vmem:[%s668] ss:$9 sm:$0xff] %v656
        %951 = vst [vmem:[%s670] ss:$9 sm:$0xff] %v657
        %952 = vst [vmem:[%s672] ss:$9 sm:$0xff] %v658
        %v953 = vld [vmem:[#allocation1] sm:$0xff]
        %954 = vset.pattern.permute.xlu0 0
        %955 = vperm.xlu0 %954, %v674
        %v956 = vpop.permute.xlu0 %955
        %957 = vset.pattern.permute.xlu0 0
        %958 = vperm.xlu0 %957, %v683
        %v959 = vpop.permute.xlu0 %958
        %960 = vset.pattern.permute.xlu0 0
        %961 = vperm.xlu0 %960, %v692
        %v962 = vpop.permute.xlu0 %961
        %963 = vset.pattern.permute.xlu0 0
        %964 = vperm.xlu0 %963, %v701
        %v965 = vpop.permute.xlu0 %964
        %966 = vset.pattern.permute.xlu0 0
        %967 = vperm.xlu0 %966, %v710
        %v968 = vpop.permute.xlu0 %967
        %969 = vset.pattern.permute.xlu0 0
        %970 = vperm.xlu0 %969, %v719
        %v971 = vpop.permute.xlu0 %970
        %972 = vset.pattern.permute.xlu0 0
        %973 = vperm.xlu0 %972, %v728
        %v974 = vpop.permute.xlu0 %973
        %975 = vset.pattern.permute.xlu0 0
        %976 = vperm.xlu0 %975, %v737
        %v977 = vpop.permute.xlu0 %976
        %978 = vset.pattern.permute.xlu0 0
        %979 = vperm.xlu0 %978, %v746
        %v980 = vpop.permute.xlu0 %979
        %981 = vset.pattern.permute.xlu0 0
        %982 = vperm.xlu0 %981, %v755
        %v983 = vpop.permute.xlu0 %982
        %984 = vset.pattern.permute.xlu0 0
        %985 = vperm.xlu0 %984, %v764
        %v986 = vpop.permute.xlu0 %985
        %987 = vset.pattern.permute.xlu0 0
        %988 = vperm.xlu0 %987, %v773
        %v989 = vpop.permute.xlu0 %988
        %990 = vset.pattern.permute.xlu0 0
        %991 = vperm.xlu0 %990, %v782
        %v992 = vpop.permute.xlu0 %991
        %993 = vset.pattern.permute.xlu0 0
        %994 = vperm.xlu0 %993, %v791
        %v995 = vpop.permute.xlu0 %994
        %996 = vset.pattern.permute.xlu0 0
        %997 = vperm.xlu0 %996, %v800
        %v998 = vpop.permute.xlu0 %997
        %999 = vset.pattern.permute.xlu0 0
        %1000 = vperm.xlu0 %999, %v809
        %v1001 = vpop.permute.xlu0 %1000
        %1002 = vset.pattern.permute.xlu0 0
        %1003 = vperm.xlu0 %1002, %v818
        %v1004 = vpop.permute.xlu0 %1003
        %1005 = vset.pattern.permute.xlu0 0
        %1006 = vperm.xlu0 %1005, %v827
        %v1007 = vpop.permute.xlu0 %1006
        %1008 = vset.pattern.permute.xlu0 0
        %1009 = vperm.xlu0 %1008, %v836
        %v1010 = vpop.permute.xlu0 %1009
        %1011 = vset.pattern.permute.xlu0 0
        %1012 = vperm.xlu0 %1011, %v845
        %v1013 = vpop.permute.xlu0 %1012
        %1014 = vset.pattern.permute.xlu0 0
        %1015 = vperm.xlu0 %1014, %v854
        %v1016 = vpop.permute.xlu0 %1015
        %1017 = vset.pattern.permute.xlu0 0
        %1018 = vperm.xlu0 %1017, %v863
        %v1019 = vpop.permute.xlu0 %1018
        %1020 = vset.pattern.permute.xlu0 0
        %1021 = vperm.xlu0 %1020, %v872
        %v1022 = vpop.permute.xlu0 %1021
        %1023 = vset.pattern.permute.xlu0 0
        %1024 = vperm.xlu0 %1023, %v881
        %v1025 = vpop.permute.xlu0 %1024
        %1026 = vset.pattern.permute.xlu0 0
        %1027 = vperm.xlu0 %1026, %v890
        %v1028 = vpop.permute.xlu0 %1027
        %1029 = vset.pattern.permute.xlu0 0
        %1030 = vperm.xlu0 %1029, %v899
        %v1031 = vpop.permute.xlu0 %1030
        %1032 = vset.pattern.permute.xlu0 0
        %1033 = vperm.xlu0 %1032, %v908
        %v1034 = vpop.permute.xlu0 %1033
        %1035 = vset.pattern.permute.xlu0 0
        %1036 = vperm.xlu0 %1035, %v917
        %v1037 = vpop.permute.xlu0 %1036
        %1038 = vset.pattern.permute.xlu0 0
        %1039 = vperm.xlu0 %1038, %v926
        %v1040 = vpop.permute.xlu0 %1039
        %1041 = vset.pattern.permute.xlu0 0
        %1042 = vperm.xlu0 %1041, %v935
        %v1043 = vpop.permute.xlu0 %1042
        %1044 = vset.pattern.permute.xlu0 0
        %1045 = vperm.xlu0 %1044, %v944
        %v1046 = vpop.permute.xlu0 %1045
        %1047 = vset.pattern.permute.xlu0 0
        %1048 = vperm.xlu0 %1047, %v953
        %v1049 = vpop.permute.xlu0 %1048
        %v1050 = vlaneseq
        %v1051 = vand.u32 %v1050, 127
        %v1052 = vperm.slane %v956, %v1051
        %v1053 = vadd.s32 %v1051, 4294967288
        %v1054 = vperm.slane %v959, %v1053
        %vm1055 = vcmask 130112
        %v1056 = vsel %vm1055, %v1054, %v1052
        %v1057 = vadd.s32 %v1051, 4294967280
        %v1058 = vperm.slane %v962, %v1057
        %vm1059 = vcmask 195712
        %v1060 = vsel %vm1059, %v1058, %v1056
        %v1061 = vadd.s32 %v1051, 4294967272
        %v1062 = vperm.slane %v965, %v1061
        %vm1063 = vcmask 261312
        %v1064 = vsel %vm1063, %v1062, %v1060
        %v1065 = vadd.s32 %v1051, 4294967264
        %v1066 = vperm.slane %v968, %v1065
        %vm1067 = vcmask 326912
        %v1068 = vsel %vm1067, %v1066, %v1064
        %v1069 = vadd.s32 %v1051, 4294967256
        %v1070 = vperm.slane %v971, %v1069
        %vm1071 = vcmask 392512
        %v1072 = vsel %vm1071, %v1070, %v1068
        %v1073 = vadd.s32 %v1051, 4294967248
        %v1074 = vperm.slane %v974, %v1073
        %vm1075 = vcmask 458112
        %v1076 = vsel %vm1075, %v1074, %v1072
        %v1077 = vadd.s32 %v1051, 4294967240
        %v1078 = vperm.slane %v977, %v1077
        %vm1079 = vcmask 523712
        %v1080 = vsel %vm1079, %v1078, %v1076
        %v1081 = vadd.s32 %v1051, 4294967232
        %v1082 = vperm.slane %v980, %v1081
        %vm1083 = vcmask 589312
        %v1084 = vsel %vm1083, %v1082, %v1080
        %v1085 = vadd.s32 %v1051, 4294967224
        %v1086 = vperm.slane %v983, %v1085
        %vm1087 = vcmask 654912
        %v1088 = vsel %vm1087, %v1086, %v1084
        %v1089 = vadd.s32 %v1051, 4294967216
        %v1090 = vperm.slane %v986, %v1089
        %vm1091 = vcmask 720512
        %v1092 = vsel %vm1091, %v1090, %v1088
        %v1093 = vadd.s32 %v1051, 4294967208
        %v1094 = vperm.slane %v989, %v1093
        %vm1095 = vcmask 786112
        %v1096 = vsel %vm1095, %v1094, %v1092
        %v1097 = vadd.s32 %v1051, 4294967200
        %v1098 = vperm.slane %v992, %v1097
        %vm1099 = vcmask 851712
        %v1100 = vsel %vm1099, %v1098, %v1096
        %v1101 = vadd.s32 %v1051, 4294967192
        %v1102 = vperm.slane %v995, %v1101
        %vm1103 = vcmask 917312
        %v1104 = vsel %vm1103, %v1102, %v1100
        %v1105 = vadd.s32 %v1051, 4294967184
        %v1106 = vperm.slane %v998, %v1105
        %vm1107 = vcmask 982912
        %v1108 = vsel %vm1107, %v1106, %v1104
        %v1109 = vadd.s32 %v1051, 4294967176
        %v1110 = vperm.slane %v1001, %v1109
        %vm1111 = vcmask 1048512
        %v1112 = vsel %vm1111, %v1110, %v1108
        %v1113 = vperm.slane %v1004, %v1051
        %v1114 = vperm.slane %v1007, %v1053
        %v1115 = vsel %vm1055, %v1114, %v1113
        %v1116 = vperm.slane %v1010, %v1057
        %v1117 = vsel %vm1059, %v1116, %v1115
        %v1118 = vperm.slane %v1013, %v1061
        %v1119 = vsel %vm1063, %v1118, %v1117
        %v1120 = vperm.slane %v1016, %v1065
        %v1121 = vsel %vm1067, %v1120, %v1119
        %v1122 = vperm.slane %v1019, %v1069
        %v1123 = vsel %vm1071, %v1122, %v1121
        %v1124 = vperm.slane %v1022, %v1073
        %v1125 = vsel %vm1075, %v1124, %v1123
        %v1126 = vperm.slane %v1025, %v1077
        %v1127 = vsel %vm1079, %v1126, %v1125
        %v1128 = vperm.slane %v1028, %v1081
        %v1129 = vsel %vm1083, %v1128, %v1127
        %v1130 = vperm.slane %v1031, %v1085
        %v1131 = vsel %vm1087, %v1130, %v1129
        %v1132 = vperm.slane %v1034, %v1089
        %v1133 = vsel %vm1091, %v1132, %v1131
        %v1134 = vperm.slane %v1037, %v1093
        %v1135 = vsel %vm1095, %v1134, %v1133
        %v1136 = vperm.slane %v1040, %v1097
        %v1137 = vsel %vm1099, %v1136, %v1135
        %v1138 = vperm.slane %v1043, %v1101
        %v1139 = vsel %vm1103, %v1138, %v1137
        %v1140 = vperm.slane %v1046, %v1105
        %v1141 = vsel %vm1107, %v1140, %v1139
        %v1142 = vperm.slane %v1049, %v1109
        %v1143 = vsel %vm1111, %v1142, %v1141
        %v1144 = vrot.slane %v1143, 7
        %vm1145 = vcmask 1040384
        %v1146 = vsel %vm1145, %v1112, %v1144
        %v1148 = vlaneseq
        %vm1149 = vcmp.ge.s32.totalorder %v1148, 0
        %vm1150 = vcmp.lt.s32.totalorder %v1148, 256
        %vm1151 = vmand %vm1149, %vm1150
        %1152 = vst.msk [vmem:[%s165] sm:$0x3] %vm1151, %v1146
        %s1153 = sand.u32 %s94, 1
        %s1154 = scalar_lea.sflag [#allocation4], %s1153
        %s1155 = sand.u32 %s94, 1
        %s1156 = smul.addr %s1155, 2
        %s1157 = scalar_lea.vmem [#allocation3], %s1156
        // Predicated region
        $region33: #{tpu_custom_call.1} parent=31 // pred_check
          %p1158 = pneg %p104
        $region34: #{tpu_custom_call.1} parent=31 // pred_check_branch
          %1160 = sbr.rel (%p1158) target = $region36
        $region35: #{tpu_custom_call.1} parent=31 // pred_region
          %1162 = vsyncadd %s1154, 0
          %s1163 = smul.addr %s18, 2
          %s1164 = scalar_lea.hbm %s3, %s1163
          %s1166 = sshll.u32 %s1157, 4
          %s1167 = int_to_ptr.vmem [resolvable:$true] %s1166
          %s1168 = sshll.u32 %s1164, 4
          %s1169 = int_to_ptr.hbm [resolvable:$true] %s1168
          %1171 = dma.vmem_to_hbm [thread:$0]  %s1167, 32, %s1169, %s1154
        $region36: #{tpu_custom_call.1} parent=31 // pred_fallthru
          _
      $region32: #{tpu_custom_call.1} parent=5 // pred_fallthru
        _
      %p1172 = scmp.le.s32.totalorder 2, %s13
      // Predicated region
      $region37: #{tpu_custom_call.1} parent=5 // pred_check
        %p1173 = pneg %p1172
      $region38: #{tpu_custom_call.1} parent=5 // pred_check_branch
        %1175 = sbr.rel (%p1173) target = $region40
      $region39: #{tpu_custom_call.1} parent=5 // pred_region
        %s1176 = ssub.s32 %s13, 2
        // Predicated region
        $region41: #{tpu_custom_call.1} parent=39 // pred_check
          %p1177 = pneg %p110
        $region42: #{tpu_custom_call.1} parent=39 // pred_check_branch
          %1179 = sbr.rel (%p1177) target = $region44
        $region43: #{tpu_custom_call.1} parent=39 // pred_region
          %s1180 = sand.u32 %s95, 1
          %s1181 = scalar_lea.sflag [#allocation4], %s1180
          %s1182 = sand.u32 %s95, 1
          %s1183 = smul.addr %s1182, 2
          %s1184 = scalar_lea.vmem [#allocation3], %s1183
          %1186 = dma.done %s1181, 32
        $region44: #{tpu_custom_call.1} parent=39 // pred_fallthru
          _
      $region40: #{tpu_custom_call.1} parent=5 // pred_fallthru
        _
    $region6: #{tpu_custom_call.1} parent=1 // loop_footer
      %s17 = sadd.s32 1, %s13
    $region7: #{tpu_custom_call.1} parent=1 // loop_footer_branch
      %12 = sbr.rel target = $region3
    $region8: #{tpu_custom_call.1} parent=1 // loop_exit
      _
    %1187 = vsyncpa [#allocation4], 1
    %s1188 = scalar_lea.sflag [#allocation4], 1
    %1189 = vsyncpa %s1188, 1

</llo_original>
